<compile_context>
chip_gen: v7x
topology: tpu7x:2x2x1
jax: 0.10.0
libtpu: 0.0.40
codegen_flags: <defaults>
</compile_context>

<pallas_src>
import functools

import jax
import jax.numpy as jnp
from jax import lax
from jax.experimental import pallas as pl
from jax.experimental.pallas import tpu as pltpu


def _ridge_kernel(x_ref, w_ref, b_ref, o_ref, *, tk, k_total, grid_k):
    # x_ref: (grid_k, tm, tk)  VMEM-resident activation (K zero-padded to grid_k*tk)
    # w_ref: (tn, tk)          weight tile in PyTorch (N, K) layout
    # b_ref: (1, tn)           bias row
    # o_ref: (tm, tn)          f32 output block, resident across the K axis
    k = pl.program_id(2)

    @pl.when(k == 0)
    def _():
        o_ref[...] = jnp.zeros_like(o_ref)

    x_slab = x_ref[k]  # (tm, tk); leading-axis dynamic index, always in-bounds

    def accum(w_tile):
        # x (tm, tk) . W (tn, tk) contracting on K  ==  x @ W.T  -> (tm, tn)
        o_ref[...] += lax.dot_general(
            x_slab,
            w_tile,
            dimension_numbers=(((1,), (1,)), ((), ())),
            preferred_element_type=jnp.float32,
        ).astype(o_ref.dtype)

    rem = k_total - (grid_k - 1) * tk  # Python int; == tk when K % tk == 0
    if rem == tk:
        accum(w_ref[...])
    else:
        # Ragged last K block: zero the weight columns past the true K so that
        # unspecified DMA padding never reaches the accumulator.  (The padded x
        # columns are exact zeros from the wrapper, so x needs no mask.)
        @pl.when(k != grid_k - 1)
        def _():
            accum(w_ref[...])

        @pl.when(k == grid_k - 1)
        def _():
            col = lax.broadcasted_iota(jnp.int32, w_ref.shape, 1)
            accum(jnp.where(col < rem, w_ref[...], 0.0))

    @pl.when(k == grid_k - 1)
    def _():
        o_ref[...] += b_ref[...].astype(o_ref.dtype)


def _round_up(a, b):
    return -(-a // b) * b


def _select_tiles(M, N, K):
    """Pick (tm, tn, tk, vmem_limit_bytes) from the device VMEM capacity."""
    itemsize = 4  # f32
    try:
        vmem_cap = int(pltpu.get_tpu_info().vmem_capacity_bytes)
    except Exception:
        vmem_cap = 64 << 20  # v7x has the smallest VMEM; be conservative
    budget = min(int(vmem_cap * 0.6), 40 << 20)  # headroom for compiler scratch

    # tm: one block over the whole (small) batch so the weight streams once.
    tm = M if M <= 384 else 256
    # Cap tm if the resident x block (~2 * tm * K_pad * 4 B) would eat the budget.
    per_row = 2 * _round_up(max(K, 128), 128) * itemsize
    max_tm = max(8, ((budget // 2) // per_row) // 8 * 8)
    if tm > max_tm:
        tm = max_tm
    grid_m = pl.cdiv(M, tm)

    # tn: lane-dense output / weight-row tile (full N when small).
    tn = N if N <= 512 else 512
    # v7x megacore: when grid_m == 1 the N axis is what shards across the 2 TCs.
    if grid_m == 1 and pl.cdiv(N, tn) < 2 and N >= 256:
        tn = max(128, _round_up(-(-N // 2), 128))

    # tk: the largest tile the double-buffered working set allows; a ragged last
    # block is masked in-kernel, so tk does NOT need to divide K.
    def footprint(tk):
        k_pad = K if K <= tk else _round_up(K, tk)
        x_b = 2 * tm * k_pad * itemsize        # resident activation (counted x2)
        w_b = 2 * tn * tk * itemsize           # double-buffered weight tile
        o_b = 2 * tm * tn * itemsize           # resident output block
        b_b = 2 * max(tn, 128) * itemsize      # bias row
        return x_b + w_b + o_b + b_b

    tk = 128
    for cand in (2048, 1536, 1024, 512, 256, 128):
        cand = min(cand, K)
        if footprint(cand) <= budget:
            tk = cand
            break
    if K <= tk:
        tk = K

    vmem_limit = min(int(vmem_cap * 0.75),
                     max(footprint(tk) + (16 << 20), 32 << 20))
    return tm, tn, tk, int(vmem_limit)


def ridge_regression(x, weight, bias):
    """Pallas forward of nn.Linear: y = x @ weight.T + bias.

    x:      (M, K)  float32
    weight: (N, K)  float32   -- PyTorch Linear layout (out_features, in_features)
    bias:   (N,)    float32
    """
    M, K = x.shape
    N, K2 = weight.shape
    assert K == K2, f"in_features mismatch: x has {K}, weight has {K2}"
    assert bias.shape == (N,)

    tm, tn, tk, vmem_limit = _select_tiles(M, N, K)

    grid_m = pl.cdiv(M, tm)
    grid_n = pl.cdiv(N, tn)
    grid_k = pl.cdiv(K, tk)
    k_pad = grid_k * tk

    # Only the small (M, K) activation is padded / reshaped (never the weight):
    # (M, K) -> zero-pad K to grid_k*tk -> (grid_k, M, tk), so each K grid step
    # indexes one leading slab of the VMEM-resident activation.
    x_in = x if k_pad == K else jnp.pad(x, ((0, 0), (0, k_pad - K)))
    x_in = x_in.reshape(M, grid_k, tk).transpose(1, 0, 2)

    b2 = bias.reshape(1, N)  # broadcastable row (cheap reshape, no transpose)

    kernel = functools.partial(_ridge_kernel, tk=tk, k_total=K, grid_k=grid_k)

    return pl.pallas_call(
        kernel,
        out_shape=jax.ShapeDtypeStruct((M, N), x.dtype),
        grid_spec=pltpu.PrefetchScalarGridSpec(
            num_scalar_prefetch=0,
            grid=(grid_m, grid_n, grid_k),
            in_specs=[
                # Activation: block index constant over (j, k) -> loaded once.
                pl.BlockSpec((grid_k, tm, tk), lambda i, j, k: (0, i, 0)),
                # Weight tile in native (N, K) layout: streamed exactly once.
                pl.BlockSpec((tn, tk), lambda i, j, k: (j, k)),
                # Bias row.
                pl.BlockSpec((1, tn), lambda i, j, k: (0, j)),
            ],
            out_specs=pl.BlockSpec((tm, tn), lambda i, j, k: (i, j)),
        ),
        compiler_params=pltpu.CompilerParams(
            dimension_semantics=("parallel", "parallel", "arbitrary"),
            vmem_limit_bytes=vmem_limit,
        ),
    )(x_in, weight, b2)


def _reference(x, weight, bias):
    return jnp.dot(x, weight.T, precision=jax.lax.Precision.HIGHEST) + bias


def _check(batch, input_size, out_features, key):
    kx, kw, kb = jax.random.split(key, 3)
    x = jax.random.normal(kx, (batch, input_size), dtype=jnp.float32)
    # Deterministic init mimicking PyTorch Linear (uniform in +/- 1/sqrt(fan_in)).
    bound = 1.0 / jnp.sqrt(jnp.float32(input_size))
    weight = jax.random.uniform(kw, (out_features, input_size),
                                dtype=jnp.float32, minval=-bound, maxval=bound)
    bias = jax.random.uniform(kb, (out_features,),
                              dtype=jnp.float32, minval=-bound, maxval=bound)

    y = jax.block_until_ready(ridge_regression(x, weight, bias))
    y_ref = _reference(x, weight, bias)
    assert y.shape == (batch, out_features)
    err = float(jnp.max(jnp.abs(y - y_ref)))
    assert jnp.allclose(y, y_ref, atol=1e-3, rtol=1e-3), f"max |err| = {err}"


if __name__ == "__main__":
    key = jax.random.PRNGKey(0)
    k1, k2 = jax.random.split(key)

    # Small shape matching the module defaults (batch=8, input=32, out=128).
    _check(batch=8, input_size=32, out_features=128, key=k1)
    # Slightly larger shape exercising the ragged-K in-kernel mask (K % tk != 0),
    # ragged N edge blocks, and a multi-block ("parallel") N grid.
    _check(batch=16, input_size=3000, out_features=384, key=k2)

    print("KERNEL_OK")
</pallas_src>

<mosaic_0001>
module attributes {stable_mosaic.version = 11 : i64} {
  func.func @_ridge_kernel(%arg0: i32, %arg1: i32, %arg2: i32, %arg3: memref<1x8x32xf32, #tpu.memory_space<vmem>>, %arg4: memref<128x32xf32, #tpu.memory_space<vmem>>, %arg5: memref<1x128xf32, #tpu.memory_space<vmem>>, %arg6: memref<8x128xf32, #tpu.memory_space<vmem>>) attributes {dimension_semantics = [#tpu.dimension_semantics<parallel>, #tpu.dimension_semantics<parallel>, #tpu.dimension_semantics<arbitrary>], iteration_bounds = array<i64: 1, 1, 1>, scalar_prefetch = 0 : i64, scratch_operands = 0 : i64, tpu.core_type = #tpu.core_type<tc>, window_params = [{transform_indices = @transform_0, window_bounds = array<i64: 1, 8, 32>}, {transform_indices = @transform_1, window_bounds = array<i64: 128, 32>}, {transform_indices = @transform_2, window_bounds = array<i64: 1, 128>}, {transform_indices = @transform_3, window_bounds = array<i64: 8, 128>}]} {
    %c0_i32 = arith.constant 0 : i32
    %0 = arith.cmpi eq, %arg2, %c0_i32 : i32
    %1 = arith.extui %0 : i1 to i32
    %c0_i32_0 = arith.constant 0 : i32
    %2 = arith.cmpi ne, %1, %c0_i32_0 : i32
    scf.if %2 {
      %cst_10 = arith.constant 0.000000e+00 : f32
      %14 = vector.broadcast %cst_10 : f32 to vector<8x128xf32>
      %c0_11 = arith.constant 0 : index
      %c0_12 = arith.constant 0 : index
      %15 = vector.load %arg6[%c0_11, %c0_12] : memref<8x128xf32, #tpu.memory_space<vmem>>, vector<8x128xf32>
      tpu.vector_store %arg6[%c0_11, %c0_12], %14 {strides = array<i32>} : memref<8x128xf32, #tpu.memory_space<vmem>>, vector<8x128xf32>,
    } else {
    }
    %3 = arith.index_cast %arg2 : i32 to index
    %c0 = arith.constant 0 : index
    %c0_1 = arith.constant 0 : index
    %4 = vector.load %arg3[%3, %c0, %c0_1] : memref<1x8x32xf32, #tpu.memory_space<vmem>>, vector<1x8x32xf32>
    %5 = vector.shape_cast %4 : vector<1x8x32xf32> to vector<8x32xf32>
    %c0_2 = arith.constant 0 : index
    %c0_3 = arith.constant 0 : index
    %6 = vector.load %arg4[%c0_2, %c0_3] : memref<128x32xf32, #tpu.memory_space<vmem>>, vector<128x32xf32>
    %c0_4 = arith.constant 0 : index
    %c0_5 = arith.constant 0 : index
    %7 = vector.load %arg6[%c0_4, %c0_5] : memref<8x128xf32, #tpu.memory_space<vmem>>, vector<8x128xf32>
    %cst = arith.constant dense<0.000000e+00> : vector<8x128xf32>
    %8 = tpu.matmul %5, %6, %cst {dimension_numbers = #tpu.dot_dimension_numbers<[1], [1], [0], [0], [0, 0, 1, 0], [], []>} : vector<8x32xf32>, vector<128x32xf32>, vector<8x128xf32> -> vector<8x128xf32>
    %9 = arith.addf %7, %8 : vector<8x128xf32>
    %c0_6 = arith.constant 0 : index
    %c0_7 = arith.constant 0 : index
    %10 = vector.load %arg6[%c0_6, %c0_7] : memref<8x128xf32, #tpu.memory_space<vmem>>, vector<8x128xf32>
    tpu.vector_store %arg6[%c0_6, %c0_7], %9 {strides = array<i32>} : memref<8x128xf32, #tpu.memory_space<vmem>>, vector<8x128xf32>,
    %c0_i32_8 = arith.constant 0 : i32
    %11 = arith.cmpi eq, %arg2, %c0_i32_8 : i32
    %12 = arith.extui %11 : i1 to i32
    %c0_i32_9 = arith.constant 0 : i32
    %13 = arith.cmpi ne, %12, %c0_i32_9 : i32
    scf.if %13 {
      %c0_10 = arith.constant 0 : index
      %c0_11 = arith.constant 0 : index
      %14 = vector.load %arg6[%c0_10, %c0_11] : memref<8x128xf32, #tpu.memory_space<vmem>>, vector<8x128xf32>
      %c0_12 = arith.constant 0 : index
      %c0_13 = arith.constant 0 : index
      %15 = vector.load %arg5[%c0_12, %c0_13] : memref<1x128xf32, #tpu.memory_space<vmem>>, vector<1x128xf32>
      %16 = vector.broadcast %15 : vector<1x128xf32> to vector<8x128xf32>
      %17 = arith.addf %14, %16 : vector<8x128xf32>
      %c0_14 = arith.constant 0 : index
      %c0_15 = arith.constant 0 : index
      %18 = vector.load %arg6[%c0_14, %c0_15] : memref<8x128xf32, #tpu.memory_space<vmem>>, vector<8x128xf32>
      tpu.vector_store %arg6[%c0_14, %c0_15], %17 {strides = array<i32>} : memref<8x128xf32, #tpu.memory_space<vmem>>, vector<8x128xf32>,
    } else {
    }
    return
  }
  func.func @transform_0(%arg0: i32, %arg1: i32, %arg2: i32) -> (i32, i32, i32) {
    %c0_i32 = arith.constant 0 : i32
    %c0_i32_0 = arith.constant 0 : i32
    %c0_i32_1 = arith.constant 0 : i32
    return %c0_i32, %arg0, %c0_i32_0 : i32, i32, i32
  }
  func.func @transform_1(%arg0: i32, %arg1: i32, %arg2: i32) -> (i32, i32) {
    %c0_i32 = arith.constant 0 : i32
    return %arg1, %arg2 : i32, i32
  }
  func.func @transform_2(%arg0: i32, %arg1: i32, %arg2: i32) -> (i32, i32) {
    %c0_i32 = arith.constant 0 : i32
    %c0_i32_0 = arith.constant 0 : i32
    return %c0_i32, %arg1 : i32, i32
  }
  func.func @transform_3(%arg0: i32, %arg1: i32, %arg2: i32) -> (i32, i32) {
    %c0_i32 = arith.constant 0 : i32
    return %arg0, %arg1 : i32, i32
  }
}

</mosaic_0001>

<llo_original>
// kernel: tpu_custom_call.1
$region0: #{tpu_custom_call.1}
  #allocation0 [shape = 'u32[]', space=smem, size = 0x4, offset = 0x4, fixed_abs, tag = 'smem constant byte address 0x4 - core index']
  #allocation1 [shape = 'u32[144,128]{1,0:T(1,128)}', space=vmem, size = 0x12000, scoped, tag = 'internal scratch']
  %s0 = inlined_call_operand.vmem [shape: f32[1,8,32], index: 0, kind: input, shape index: {}]
  %s1 = inlined_call_operand.vmem [shape: f32[128,32], index: 1, kind: input, shape index: {}]
  %s2 = inlined_call_operand.vmem [shape: f32[1,128], index: 2, kind: input, shape index: {}]
  %s3 = inlined_call_operand.hbm [shape: f32[8,128], index: 3, kind: output, shape index: {}]
  %s4 = sld [smem:[#allocation0]]
  $region30: #{tpu_custom_call.1} parent=0
    _
  %s6 = ssub.s32 1, %s4
  %s7 = scalar_select 0, %s6, %s4
  $region1: #{tpu_custom_call.1} parent=0
    #allocation2 [shape = 'u8[4096]{0}', space=vmem, size = 0x1000, scoped, tag = 'output window, operand 0, single buffered']
    #allocation3 [shape = 's32[1]{0}', space=sflag, size = 0x4, scoped, tag = 'scoped memory for tpu_custom_call.1']
    %8 = vsyncpa [#allocation3], 0
    // Predicated region
    $region2: #{tpu_custom_call.1} parent=1 // pred_check
      _
    $region3: #{tpu_custom_call.1} parent=1 // pred_check_branch
      %10 = sbr.rel (0) target = $region5
    $region4: #{tpu_custom_call.1} parent=1 // pred_region
      _
    $region5: #{tpu_custom_call.1} parent=1 // pred_fallthru
      _
    // Predicated region
    $region6: #{tpu_custom_call.1} parent=1 // pred_check
      _
    $region7: #{tpu_custom_call.1} parent=1 // pred_check_branch
      %12 = sbr.rel (0) target = $region9
    $region8: #{tpu_custom_call.1} parent=1 // pred_region
      _
    $region9: #{tpu_custom_call.1} parent=1 // pred_fallthru
      _
    // Predicated region
    $region10: #{tpu_custom_call.1} parent=1 // pred_check
      _
    $region11: #{tpu_custom_call.1} parent=1 // pred_check_branch
      %14 = sbr.rel (0) target = $region13
    $region12: #{tpu_custom_call.1} parent=1 // pred_region
      _
    $region13: #{tpu_custom_call.1} parent=1 // pred_fallthru
      _
    %p15 = scmp.eq.s32.totalorder 0, 0
    // Predicated region
    $region14: #{tpu_custom_call.1} parent=1 // pred_check
      %p16 = pneg %p15
    $region15: #{tpu_custom_call.1} parent=1 // pred_check_branch
      %18 = sbr.rel (%p16) target = $region17
    $region16: #{tpu_custom_call.1} parent=1 // pred_region
      %19 = vst [vmem:[#allocation2] sm:$0xff] 0.0
    $region17: #{tpu_custom_call.1} parent=1 // pred_fallthru
      _
    %s20 = smul.u32 0, 8
    %s21 = scalar_lea.vmem %s0, %s20
    %v22 = vld [vmem:[%s21] sm:$0xff]
    %v23 = vld [vmem:[%s1] sm:$0xff]
    %v24 = vld [vmem:[%s1 + $0x8] sm:$0xff]
    %v25 = vld [vmem:[%s1 + $0x10] sm:$0xff]
    %v26 = vld [vmem:[%s1 + $0x18] sm:$0xff]
    %v27 = vld [vmem:[%s1 + $0x20] sm:$0xff]
    %v28 = vld [vmem:[%s1 + $0x28] sm:$0xff]
    %v29 = vld [vmem:[%s1 + $0x30] sm:$0xff]
    %v30 = vld [vmem:[%s1 + $0x38] sm:$0xff]
    %v31 = vld [vmem:[%s1 + $0x40] sm:$0xff]
    %v32 = vld [vmem:[%s1 + $0x48] sm:$0xff]
    %v33 = vld [vmem:[%s1 + $0x50] sm:$0xff]
    %v34 = vld [vmem:[%s1 + $0x58] sm:$0xff]
    %v35 = vld [vmem:[%s1 + $0x60] sm:$0xff]
    %v36 = vld [vmem:[%s1 + $0x68] sm:$0xff]
    %v37 = vld [vmem:[%s1 + $0x70] sm:$0xff]
    %v38 = vld [vmem:[%s1 + $0x78] sm:$0xff]
    %v39 = vld [vmem:[#allocation2] sm:$0xff]
    %vm40 = vcmask 261120
    %v42 = vsel %vm40, %v22, 0
    %v45 = vsel %vm40, %v23, 0
    %v48 = vsel %vm40, %v24, 0
    %v51 = vsel %vm40, %v25, 0
    %v54 = vsel %vm40, %v26, 0
    %v57 = vsel %vm40, %v27, 0
    %v60 = vsel %vm40, %v28, 0
    %v63 = vsel %vm40, %v29, 0
    %v66 = vsel %vm40, %v30, 0
    %v69 = vsel %vm40, %v31, 0
    %v72 = vsel %vm40, %v32, 0
    %v75 = vsel %vm40, %v33, 0
    %v78 = vsel %vm40, %v34, 0
    %v81 = vsel %vm40, %v35, 0
    %v84 = vsel %vm40, %v36, 0
    %v87 = vsel %vm40, %v37, 0
    %v90 = vsel %vm40, %v38, 0
    %92 = vmatprep.subr.mxu0 0.0
    %93 = vmatpush1.xpose.msra.mxu0 %v45
    %94 = vmatprep.subr.mxu0 0.0
    %95 = vmatpush1.xpose.msra.mxu0 %v48
    %96 = vmatprep.subr.mxu0 0.0
    %97 = vmatpush1.xpose.msra.mxu0 %v51
    %98 = vmatprep.subr.mxu0 0.0
    %99 = vmatpush1.xpose.msra.mxu0 %v54
    %100 = vmatprep.subr.mxu0 0.0
    %101 = vmatpush1.xpose.msra.mxu0 %v57
    %102 = vmatprep.subr.mxu0 0.0
    %103 = vmatpush1.xpose.msra.mxu0 %v60
    %104 = vmatprep.subr.mxu0 0.0
    %105 = vmatpush1.xpose.msra.mxu0 %v63
    %106 = vmatprep.subr.mxu0 0.0
    %107 = vmatpush1.xpose.msra.mxu0 %v66
    %108 = vmatprep.subr.mxu0 0.0
    %109 = vmatpush1.xpose.msra.mxu0 %v69
    %110 = vmatprep.subr.mxu0 0.0
    %111 = vmatpush1.xpose.msra.mxu0 %v72
    %112 = vmatprep.subr.mxu0 0.0
    %113 = vmatpush1.xpose.msra.mxu0 %v75
    %114 = vmatprep.subr.mxu0 0.0
    %115 = vmatpush1.xpose.msra.mxu0 %v78
    %116 = vmatprep.subr.mxu0 0.0
    %117 = vmatpush1.xpose.msra.mxu0 %v81
    %118 = vmatprep.subr.mxu0 0.0
    %119 = vmatpush1.xpose.msra.mxu0 %v84
    %120 = vmatprep.subr.mxu0 0.0
    %121 = vmatpush1.xpose.msra.mxu0 %v87
    %122 = vmatprep.subr.mxu0 0.0
    %123 = vmatpush1.xpose.msra.mxu0 %v90
    %124 = vmatprep.subr.mxu0 0.0
    %125 = vmatpush1.xpose.msra.mxu0 0.0
    %126 = vmatprep.subr.mxu0 0.0
    %127 = vmatpush1.xpose.msra.mxu0 0.0
    %128 = vmatprep.subr.mxu0 0.0
    %129 = vmatpush1.xpose.msra.mxu0 0.0
    %130 = vmatprep.subr.mxu0 0.0
    %131 = vmatpush1.xpose.msra.mxu0 0.0
    %132 = vmatprep.subr.mxu0 0.0
    %133 = vmatpush1.xpose.msra.mxu0 0.0
    %134 = vmatprep.subr.mxu0 0.0
    %135 = vmatpush1.xpose.msra.mxu0 0.0
    %136 = vmatprep.subr.mxu0 0.0
    %137 = vmatpush1.xpose.msra.mxu0 0.0
    %138 = vmatprep.subr.mxu0 0.0
    %139 = vmatpush1.xpose.msra.mxu0 0.0
    %140 = vmatprep.subr.mxu0 0.0
    %141 = vmatpush1.xpose.msra.mxu0 0.0
    %142 = vmatprep.subr.mxu0 0.0
    %143 = vmatpush1.xpose.msra.mxu0 0.0
    %144 = vmatprep.subr.mxu0 0.0
    %145 = vmatpush1.xpose.msra.mxu0 0.0
    %146 = vmatprep.subr.mxu0 0.0
    %147 = vmatpush1.xpose.msra.mxu0 0.0
    %148 = vmatprep.subr.mxu0 0.0
    %149 = vmatpush1.xpose.msra.mxu0 0.0
    %150 = vmatprep.subr.mxu0 0.0
    %151 = vmatpush1.xpose.msra.mxu0 0.0
    %152 = vmatprep.subr.mxu0 0.0
    %153 = vmatpush1.xpose.msra.mxu0 0.0
    %154 = vmatprep.subr.mxu0 0.0
    %155 = vmatpush1.xpose.msra.mxu0 0.0
    %156 = vmatprep.mubr.f32.mxu0 0.0
    %157 = vmatmul.mubr.f32.gmra.mrb[0].mxu0 %v42
    %v158 = vpop.f32.mrb[0].mxu0
    %v159 = vadd.f32 0.0, %v158
    %v160 = vpop.f32.mrb[0].mxu0
    %161 = vdwg.mxu0
    %v162 = vadd.f32 %v39, %v159
    %163 = vst [vmem:[#allocation2] sm:$0xff] %v162
    // Predicated region
    $region18: #{tpu_custom_call.1} parent=1 // pred_check
      %p164 = pneg %p15
    $region19: #{tpu_custom_call.1} parent=1 // pred_check_branch
      %166 = sbr.rel (%p164) target = $region21
    $region20: #{tpu_custom_call.1} parent=1 // pred_region
      %v167 = vld [vmem:[#allocation2] sm:$0xff]
      %v168 = vld [vmem:[%s2] sm:$0x1]
      %v170 = vlaneseq
      %v171 = vshrl.u32 %v170, 7
      %v172 = vsub.s32 0, %v171
      %v173 = vrot.slane %v168, %v172
      %v175 = vadd.f32 %v167, %v173
      %176 = vst [vmem:[#allocation2] sm:$0xff] %v175
    $region21: #{tpu_custom_call.1} parent=1 // pred_fallthru
      _
    // Predicated region
    $region22: #{tpu_custom_call.1} parent=1 // pred_check
      _
    $region23: #{tpu_custom_call.1} parent=1 // pred_check_branch
      %178 = sbr.rel (0) target = $region25
    $region24: #{tpu_custom_call.1} parent=1 // pred_region
      %s180 = ssub.s32 128, 128
      %181 = vsyncadd [#allocation3], %s180
      %s183 = sshll.u32 [#allocation2], 4
      %s184 = int_to_ptr.vmem [resolvable:$true] %s183
      %186 = dma.vmem_to_hbm [thread:$0]  %s184, 128, %s3, [#allocation3]
    $region25: #{tpu_custom_call.1} parent=1 // pred_fallthru
      _
    // Predicated region
    $region26: #{tpu_custom_call.1} parent=1 // pred_check
      _
    $region27: #{tpu_custom_call.1} parent=1 // pred_check_branch
      %188 = sbr.rel (0) target = $region29
    $region28: #{tpu_custom_call.1} parent=1 // pred_region
      %189 = dma.done [#allocation3], 128
    $region29: #{tpu_custom_call.1} parent=1 // pred_fallthru
      _
    %190 = vsyncpa [#allocation3], 1

</llo_original>
